<compile_context>
chip_gen: v5e
topology: v5e:2x2
jax: 0.10.0
libtpu: 0.0.40
codegen_flags: <defaults>
</compile_context>

<pallas_src>
import functools

import jax
import jax.numpy as jnp
from jax.experimental import pallas as pl
from jax.experimental.pallas import tpu as pltpu

_LANE = 128
_SUBLANE = 8


def _round_up(x, m):
    return (x + m - 1) // m * m


# ----------------------------------------------------------------------------
# Kernel: one batch tile, all layers chained in VMEM (4 MXU matmuls + ReLUs).
# Weights are tiny (~220 KB bf16) and pinned via constant-index BlockSpecs.
# ----------------------------------------------------------------------------
def mlp_kernel(x_ref,
               w1_ref, b1_ref,
               w2_ref, b2_ref,
               w3_ref, b3_ref,
               w45_ref, b45_ref,
               out_ref):
    cdt = w1_ref.dtype                      # MXU compute dtype (bf16 or f32)

    h = jnp.dot(x_ref[...].astype(cdt), w1_ref[...],
                preferred_element_type=jnp.float32) + b1_ref[...]
    h = jnp.maximum(h, 0.0)                                   # ReLU (f32)

    h = jnp.dot(h.astype(cdt), w2_ref[...],
                preferred_element_type=jnp.float32) + b2_ref[...]
    h = jnp.maximum(h, 0.0)                                   # ReLU (f32)

    h = jnp.dot(h.astype(cdt), w3_ref[...],
                preferred_element_type=jnp.float32) + b3_ref[...]
    h = jnp.maximum(h, 0.0)                                   # ReLU (f32)

    # Plain 4th feature layer algebraically folded into the keypoint head
    # (w45 = w4 @ wo, b45 = b4 @ wo + bo).
    y = jnp.dot(h.astype(cdt), w45_ref[...],
                preferred_element_type=jnp.float32) + b45_ref[...]

    out_ref[...] = y.astype(out_ref.dtype)


# ----------------------------------------------------------------------------
# One-time parameter prep (call at model init, NOT per forward):
#   * fuse layer-4 into the head, lane-pad hidden-64 -> 128, pad output 27->32
# ----------------------------------------------------------------------------
def prepare_params(params, *, weights_dtype=jnp.bfloat16):
    (w1, b1), (w2, b2), (w3, b3), (w4, b4), (wo, bo) = params
    in_dim = w1.shape[0]                      # 48
    h1 = w1.shape[1]                          # 64
    h1_pad = _round_up(h1, _LANE)             # 128 (lane-dense first hidden)
    out_dim = wo.shape[1]                     # num_keypoints * 3 = 27
    out_pad = _round_up(out_dim, 32)          # 32 (full-array last dim)

    w45 = w4.astype(jnp.float32) @ wo.astype(jnp.float32)          # (256, 27)
    b45 = b4.astype(jnp.float32) @ wo.astype(jnp.float32) + bo     # (1, 27)

    w1p = jnp.zeros((in_dim, h1_pad), jnp.float32).at[:, :h1].set(w1)
    b1p = jnp.zeros((1, h1_pad), jnp.float32).at[:, :h1].set(b1)
    w2p = jnp.zeros((h1_pad, w2.shape[1]), jnp.float32).at[:h1, :].set(w2)

    w45p = jnp.zeros((w45.shape[0], out_pad), jnp.float32).at[:, :out_dim].set(w45)
    b45p = jnp.zeros((1, out_pad), jnp.float32).at[:, :out_dim].set(b45)

    fused = dict(
        w1=w1p.astype(weights_dtype), b1=b1p,
        w2=w2p.astype(weights_dtype), b2=b2.astype(jnp.float32),
        w3=w3.astype(weights_dtype), b3=b3.astype(jnp.float32),
        w45=w45p.astype(weights_dtype), b45=b45p,
    )
    fused = jax.tree_util.tree_map(jnp.asarray, fused)
    return fused, int(out_dim)


# ----------------------------------------------------------------------------
# Forward wrapper: batch-tiled pallas_call with resident (pre-fused) weights.
# ----------------------------------------------------------------------------
@functools.partial(jax.jit, static_argnames=("out_dim", "tile_b"))
def mlp_forward(x, fused, *, out_dim, tile_b=512):
    """x: (B, n_points, 3) float32.  Returns (B, num_keypoints, 3) float32."""
    B = x.shape[0]
    in_dim = x.shape[1] * x.shape[2]
    x2d = x.reshape(B, in_dim).astype(jnp.float32)

    # Batch tile: multiple of 8 (f32 sublane).  Cap at ceil(B/2) so the grid
    # has >= 2 steps whenever possible (both v7x TensorCores get work).
    tb = min(int(tile_b), _round_up(pl.cdiv(B, 2), _SUBLANE))
    tb = max(_SUBLANE, _round_up(tb, _SUBLANE))
    b_pad = _round_up(B, tb)

    if b_pad != B:                                  # pad batch tail only
        x2d = jnp.pad(x2d, ((0, b_pad - B), (0, 0)))

    grid = (b_pad // tb,)
    const = lambda i: (0, 0)        # weights/biases: one resident VMEM block

    out_pad = fused["w45"].shape[1]
    flops = 2 * b_pad * sum(
        int(fused[k].shape[0]) * int(fused[k].shape[1])
        for k in ("w1", "w2", "w3", "w45"))
    weight_bytes = sum(int(v.size) * v.dtype.itemsize for v in fused.values())
    bytes_accessed = weight_bytes + b_pad * in_dim * 4 + b_pad * out_pad * 4

    y_pad = pl.pallas_call(
        mlp_kernel,
        out_shape=jax.ShapeDtypeStruct((b_pad, out_pad), jnp.float32),
        grid=grid,
        in_specs=[
            pl.BlockSpec((tb, in_dim), lambda i: (i, 0)),      # x tile (K=48)
            pl.BlockSpec(fused["w1"].shape, const),
            pl.BlockSpec(fused["b1"].shape, const),
            pl.BlockSpec(fused["w2"].shape, const),
            pl.BlockSpec(fused["b2"].shape, const),
            pl.BlockSpec(fused["w3"].shape, const),
            pl.BlockSpec(fused["b3"].shape, const),
            pl.BlockSpec(fused["w45"].shape, const),
            pl.BlockSpec(fused["b45"].shape, const),
        ],
        out_specs=pl.BlockSpec((tb, out_pad), lambda i: (i, 0)),
        compiler_params=pltpu.CompilerParams(
            dimension_semantics=("parallel",),                 # megacore / 2-TC
            vmem_limit_bytes=64 * 1024 * 1024),                # v5e headroom
        cost_estimate=pl.CostEstimate(
            flops=flops, transcendentals=0, bytes_accessed=bytes_accessed),
    )(x2d, fused["w1"], fused["b1"], fused["w2"], fused["b2"],
      fused["w3"], fused["b3"], fused["w45"], fused["b45"])

    y = y_pad[:B, :out_dim]                                    # drop padding
    return y.reshape(B, out_dim // 3, 3)


# ----------------------------------------------------------------------------
# Deterministic synthetic parameters (shapes match the torch module).
# ----------------------------------------------------------------------------
def init_params(key, in_dim, dense_layer, num_keypoints):
    dims = [in_dim, *dense_layer]          # [48, 64, 256, 256, 128]
    params = []
    for i in range(len(dims) - 1):
        key, kw, kb = jax.random.split(key, 3)
        fan_in, fan_out = dims[i], dims[i + 1]
        scale = 1.0 / jnp.sqrt(fan_in)
        w = jax.random.uniform(kw, (fan_in, fan_out), jnp.float32, -scale, scale)
        b = jax.random.uniform(kb, (1, fan_out), jnp.float32, -scale, scale)
        params.append((w, b))
    # Output branches: num_keypoints x Linear(128, 3), fused along columns.
    key, kw, kb = jax.random.split(key, 3)
    fan_in = dense_layer[-1]
    scale = 1.0 / jnp.sqrt(fan_in)
    wo = jax.random.uniform(kw, (fan_in, num_keypoints * 3), jnp.float32, -scale, scale)
    bo = jax.random.uniform(kb, (1, num_keypoints * 3), jnp.float32, -scale, scale)
    params.append((wo, bo))
    return params


# Pure-JAX reference (unfused, unpadded, f32) for correctness.
def mlp_reference(x, params):
    B = x.shape[0]
    h = x.reshape(B, -1)
    (w1, b1), (w2, b2), (w3, b3), (w4, b4), (wo, bo) = params
    h = jnp.maximum(h @ w1 + b1, 0.0)
    h = jnp.maximum(h @ w2 + b2, 0.0)
    h = jnp.maximum(h @ w3 + b3, 0.0)
    h = h @ w4 + b4
    y = h @ wo + bo
    return y.reshape(B, -1, 3)


if __name__ == "__main__":
    # info = {'num_classes': None, 'max_points': 8, 'stacks': 2, 'num_keypoints': 9}
    max_points, stacks, num_keypoints = 8, 2, 9
    dense_layer = (64, 256, 256, 128)
    in_dim = max_points * stacks * 3                 # 48

    batch = 2
    n_input_points = max_points * stacks             # 16
    input_feature = 3

    key = jax.random.PRNGKey(0)
    key, kx = jax.random.split(key)
    x = jax.random.normal(kx, (batch, n_input_points, input_feature), jnp.float32)

    params = init_params(key, in_dim, dense_layer, num_keypoints)
    y_ref = mlp_reference(x, params)

    # --- f32 weights: tight check -------------------------------------------
    fused_f32, out_dim = prepare_params(params, weights_dtype=jnp.float32)
    y32 = mlp_forward(x, fused_f32, out_dim=out_dim)
    jax.block_until_ready(y32)
    assert y32.shape == (batch, num_keypoints, 3), y32.shape
    assert jnp.allclose(y32, y_ref, atol=1e-4, rtol=1e-4), "f32 mismatch vs reference"

    # --- bf16 weights/activations (default serving path): loose check -------
    fused_bf16, out_dim = prepare_params(params, weights_dtype=jnp.bfloat16)
    y16 = mlp_forward(x, fused_bf16, out_dim=out_dim)
    jax.block_until_ready(y16)
    assert y16.shape == (batch, num_keypoints, 3), y16.shape
    assert jnp.allclose(y16, y_ref, atol=5e-2, rtol=5e-2), "bf16 mismatch vs reference"

    # --- ragged batch, multi-step grid (exercises tiling + tail padding) ----
    key, kx2 = jax.random.split(key)
    xb = jax.random.normal(kx2, (37, n_input_points, input_feature), jnp.float32)
    yb = mlp_forward(xb, fused_f32, out_dim=out_dim, tile_b=16)
    jax.block_until_ready(yb)
    assert yb.shape == (37, num_keypoints, 3), yb.shape
    assert jnp.allclose(yb, mlp_reference(xb, params), atol=1e-4, rtol=1e-4), \
        "ragged-batch mismatch vs reference"

    print("KERNEL_OK")
</pallas_src>

<mosaic_0001>
module attributes {stable_mosaic.version = 11 : i64} {
  func.func @mlp_kernel(%arg0: i32, %arg1: memref<8x48xf32, #tpu.memory_space<vmem>>, %arg2: memref<48x128xf32, #tpu.memory_space<vmem>>, %arg3: memref<1x128xf32, #tpu.memory_space<vmem>>, %arg4: memref<128x256xf32, #tpu.memory_space<vmem>>, %arg5: memref<1x256xf32, #tpu.memory_space<vmem>>, %arg6: memref<256x256xf32, #tpu.memory_space<vmem>>, %arg7: memref<1x256xf32, #tpu.memory_space<vmem>>, %arg8: memref<256x32xf32, #tpu.memory_space<vmem>>, %arg9: memref<1x32xf32, #tpu.memory_space<vmem>>, %arg10: memref<8x32xf32, #tpu.memory_space<vmem>>) attributes {dimension_semantics = [#tpu.dimension_semantics<parallel>], iteration_bounds = array<i64: 1>, scalar_prefetch = 0 : i64, scratch_operands = 0 : i64, tpu.core_type = #tpu.core_type<tc>, window_params = [{transform_indices = @transform_0, window_bounds = array<i64: 8, 48>}, {pipeline_mode = #tpu.pipeline_mode<synchronous>, transform_indices = @transform_1, window_bounds = array<i64: 48, 128>}, {pipeline_mode = #tpu.pipeline_mode<synchronous>, transform_indices = @transform_2, window_bounds = array<i64: 1, 128>}, {pipeline_mode = #tpu.pipeline_mode<synchronous>, transform_indices = @transform_3, window_bounds = array<i64: 128, 256>}, {pipeline_mode = #tpu.pipeline_mode<synchronous>, transform_indices = @transform_4, window_bounds = array<i64: 1, 256>}, {pipeline_mode = #tpu.pipeline_mode<synchronous>, transform_indices = @transform_5, window_bounds = array<i64: 256, 256>}, {pipeline_mode = #tpu.pipeline_mode<synchronous>, transform_indices = @transform_6, window_bounds = array<i64: 1, 256>}, {pipeline_mode = #tpu.pipeline_mode<synchronous>, transform_indices = @transform_7, window_bounds = array<i64: 256, 32>}, {pipeline_mode = #tpu.pipeline_mode<synchronous>, transform_indices = @transform_8, window_bounds = array<i64: 1, 32>}, {transform_indices = @transform_9, window_bounds = array<i64: 8, 32>}]} {
    %c0 = arith.constant 0 : index
    %c0_0 = arith.constant 0 : index
    %0 = vector.load %arg1[%c0, %c0_0] : memref<8x48xf32, #tpu.memory_space<vmem>>, vector<8x48xf32>
    %c0_1 = arith.constant 0 : index
    %c0_2 = arith.constant 0 : index
    %1 = vector.load %arg2[%c0_1, %c0_2] : memref<48x128xf32, #tpu.memory_space<vmem>>, vector<48x128xf32>
    %cst = arith.constant dense<0.000000e+00> : vector<8x128xf32>
    %2 = tpu.matmul %0, %1, %cst {dimension_numbers = #tpu.dot_dimension_numbers<[1], [0], [0], [1], [0, 0, 1, 1], [], []>} : vector<8x48xf32>, vector<48x128xf32>, vector<8x128xf32> -> vector<8x128xf32>
    %c0_3 = arith.constant 0 : index
    %c0_4 = arith.constant 0 : index
    %3 = vector.load %arg3[%c0_3, %c0_4] : memref<1x128xf32, #tpu.memory_space<vmem>>, vector<1x128xf32>
    %4 = vector.broadcast %3 : vector<1x128xf32> to vector<8x128xf32>
    %5 = arith.addf %2, %4 : vector<8x128xf32>
    %cst_5 = arith.constant 0.000000e+00 : f32
    %6 = vector.broadcast %cst_5 : f32 to vector<8x128xf32>
    %7 = arith.maximumf %5, %6 : vector<8x128xf32>
    %c0_6 = arith.constant 0 : index
    %c0_7 = arith.constant 0 : index
    %8 = vector.load %arg4[%c0_6, %c0_7] : memref<128x256xf32, #tpu.memory_space<vmem>>, vector<128x256xf32>
    %cst_8 = arith.constant dense<0.000000e+00> : vector<8x256xf32>
    %9 = tpu.matmul %7, %8, %cst_8 {dimension_numbers = #tpu.dot_dimension_numbers<[1], [0], [0], [1], [0, 0, 1, 1], [], []>} : vector<8x128xf32>, vector<128x256xf32>, vector<8x256xf32> -> vector<8x256xf32>
    %c0_9 = arith.constant 0 : index
    %c0_10 = arith.constant 0 : index
    %10 = vector.load %arg5[%c0_9, %c0_10] : memref<1x256xf32, #tpu.memory_space<vmem>>, vector<1x256xf32>
    %11 = vector.broadcast %10 : vector<1x256xf32> to vector<8x256xf32>
    %12 = arith.addf %9, %11 : vector<8x256xf32>
    %cst_11 = arith.constant 0.000000e+00 : f32
    %13 = vector.broadcast %cst_11 : f32 to vector<8x256xf32>
    %14 = arith.maximumf %12, %13 : vector<8x256xf32>
    %c0_12 = arith.constant 0 : index
    %c0_13 = arith.constant 0 : index
    %15 = vector.load %arg6[%c0_12, %c0_13] : memref<256x256xf32, #tpu.memory_space<vmem>>, vector<256x256xf32>
    %cst_14 = arith.constant dense<0.000000e+00> : vector<8x256xf32>
    %16 = tpu.matmul %14, %15, %cst_14 {dimension_numbers = #tpu.dot_dimension_numbers<[1], [0], [0], [1], [0, 0, 1, 1], [], []>} : vector<8x256xf32>, vector<256x256xf32>, vector<8x256xf32> -> vector<8x256xf32>
    %c0_15 = arith.constant 0 : index
    %c0_16 = arith.constant 0 : index
    %17 = vector.load %arg7[%c0_15, %c0_16] : memref<1x256xf32, #tpu.memory_space<vmem>>, vector<1x256xf32>
    %18 = vector.broadcast %17 : vector<1x256xf32> to vector<8x256xf32>
    %19 = arith.addf %16, %18 : vector<8x256xf32>
    %cst_17 = arith.constant 0.000000e+00 : f32
    %20 = vector.broadcast %cst_17 : f32 to vector<8x256xf32>
    %21 = arith.maximumf %19, %20 : vector<8x256xf32>
    %c0_18 = arith.constant 0 : index
    %c0_19 = arith.constant 0 : index
    %22 = vector.load %arg8[%c0_18, %c0_19] : memref<256x32xf32, #tpu.memory_space<vmem>>, vector<256x32xf32>
    %cst_20 = arith.constant dense<0.000000e+00> : vector<8x32xf32>
    %23 = tpu.matmul %21, %22, %cst_20 {dimension_numbers = #tpu.dot_dimension_numbers<[1], [0], [0], [1], [0, 0, 1, 1], [], []>} : vector<8x256xf32>, vector<256x32xf32>, vector<8x32xf32> -> vector<8x32xf32>
    %c0_21 = arith.constant 0 : index
    %c0_22 = arith.constant 0 : index
    %24 = vector.load %arg9[%c0_21, %c0_22] : memref<1x32xf32, #tpu.memory_space<vmem>>, vector<1x32xf32>
    %25 = vector.broadcast %24 : vector<1x32xf32> to vector<8x32xf32>
    %26 = arith.addf %23, %25 : vector<8x32xf32>
    %c0_23 = arith.constant 0 : index
    %c0_24 = arith.constant 0 : index
    %27 = vector.load %arg10[%c0_23, %c0_24] : memref<8x32xf32, #tpu.memory_space<vmem>>, vector<8x32xf32>
    tpu.vector_store %arg10[%c0_23, %c0_24], %26 {strides = array<i32>} : memref<8x32xf32, #tpu.memory_space<vmem>>, vector<8x32xf32>,
    return
  }
  func.func @transform_0(%arg0: i32) -> (i32, i32) {
    %c0_i32 = arith.constant 0 : i32
    %c0_i32_0 = arith.constant 0 : i32
    return %arg0, %c0_i32 : i32, i32
  }
  func.func @transform_1(%arg0: i32) -> (i32, i32) {
    %c0_i32 = arith.constant 0 : i32
    %c0_i32_0 = arith.constant 0 : i32
    %c0_i32_1 = arith.constant 0 : i32
    return %c0_i32, %c0_i32_0 : i32, i32
  }
  func.func @transform_2(%arg0: i32) -> (i32, i32) {
    %c0_i32 = arith.constant 0 : i32
    %c0_i32_0 = arith.constant 0 : i32
    %c0_i32_1 = arith.constant 0 : i32
    return %c0_i32, %c0_i32_0 : i32, i32
  }
  func.func @transform_3(%arg0: i32) -> (i32, i32) {
    %c0_i32 = arith.constant 0 : i32
    %c0_i32_0 = arith.constant 0 : i32
    %c0_i32_1 = arith.constant 0 : i32
    return %c0_i32, %c0_i32_0 : i32, i32
  }
  func.func @transform_4(%arg0: i32) -> (i32, i32) {
    %c0_i32 = arith.constant 0 : i32
    %c0_i32_0 = arith.constant 0 : i32
    %c0_i32_1 = arith.constant 0 : i32
    return %c0_i32, %c0_i32_0 : i32, i32
  }
  func.func @transform_5(%arg0: i32) -> (i32, i32) {
    %c0_i32 = arith.constant 0 : i32
    %c0_i32_0 = arith.constant 0 : i32
    %c0_i32_1 = arith.constant 0 : i32
    return %c0_i32, %c0_i32_0 : i32, i32
  }
  func.func @transform_6(%arg0: i32) -> (i32, i32) {
    %c0_i32 = arith.constant 0 : i32
    %c0_i32_0 = arith.constant 0 : i32
    %c0_i32_1 = arith.constant 0 : i32
    return %c0_i32, %c0_i32_0 : i32, i32
  }
  func.func @transform_7(%arg0: i32) -> (i32, i32) {
    %c0_i32 = arith.constant 0 : i32
    %c0_i32_0 = arith.constant 0 : i32
    %c0_i32_1 = arith.constant 0 : i32
    return %c0_i32, %c0_i32_0 : i32, i32
  }
  func.func @transform_8(%arg0: i32) -> (i32, i32) {
    %c0_i32 = arith.constant 0 : i32
    %c0_i32_0 = arith.constant 0 : i32
    %c0_i32_1 = arith.constant 0 : i32
    return %c0_i32, %c0_i32_0 : i32, i32
  }
  func.func @transform_9(%arg0: i32) -> (i32, i32) {
    %c0_i32 = arith.constant 0 : i32
    %c0_i32_0 = arith.constant 0 : i32
    return %arg0, %c0_i32 : i32, i32
  }
}

</mosaic_0001>

<llo_original>
// kernel: mlp_forward.1
$region0: #{mlp_forward.1}
  #allocation0 [shape = 'u32[]', space=smem, size = 0x4, offset = 0x4, fixed_abs, tag = 'smem constant byte address 0x4 - core index']
  #allocation1 [shape = 'u32[72,128]{1,0:T(1,128)}', space=vmem, size = 0x9000, scoped, tag = 'internal scratch']
  %s0 = inlined_call_operand.vmem [shape: f32[8,48], index: 0, kind: input, shape index: {}]
  %s1 = inlined_call_operand.vmem [shape: f32[48,128], index: 1, kind: input, shape index: {}]
  %s2 = inlined_call_operand.vmem [shape: f32[1,128], index: 2, kind: input, shape index: {}]
  %s3 = inlined_call_operand.vmem [shape: f32[128,256], index: 3, kind: input, shape index: {}]
  %s4 = inlined_call_operand.vmem [shape: f32[1,256], index: 4, kind: input, shape index: {}]
  %s5 = inlined_call_operand.hbm [shape: f32[256,256], index: 5, kind: input, shape index: {}]
  %s6 = inlined_call_operand.vmem [shape: f32[1,256], index: 6, kind: input, shape index: {}]
  %s7 = inlined_call_operand.vmem [shape: f32[256,32], index: 7, kind: input, shape index: {}]
  %s8 = inlined_call_operand.vmem [shape: f32[1,32], index: 8, kind: input, shape index: {}]
  %s9 = inlined_call_operand.vmem [shape: f32[8,32], index: 9, kind: output, shape index: {}]
  %s10 = sld [smem:[#allocation0]]
  $region50: #{mlp_forward.1} parent=0
    _
  %s12 = ssub.s32 1, %s10
  %s13 = scalar_select 0, %s12, %s10
  $region1: #{mlp_forward.1} parent=0
    #allocation2 [shape = 'u8[262144]{0}', space=vmem, size = 0x40000, scoped, tag = 'input window, operand 5, single buffered']
    #allocation3 [shape = 's32[1]{0}', space=sflag, size = 0x4, scoped, tag = 'scoped memory for mlp_forward.1']
    %14 = vsyncpa [#allocation3], 0
    // Predicated region
    $region2: #{mlp_forward.1} parent=1 // pred_check
      _
    $region3: #{mlp_forward.1} parent=1 // pred_check_branch
      %16 = sbr.rel (0) target = $region5
    $region4: #{mlp_forward.1} parent=1 // pred_region
      _
    $region5: #{mlp_forward.1} parent=1 // pred_fallthru
      _
    // Predicated region
    $region6: #{mlp_forward.1} parent=1 // pred_check
      _
    $region7: #{mlp_forward.1} parent=1 // pred_check_branch
      %18 = sbr.rel (0) target = $region9
    $region8: #{mlp_forward.1} parent=1 // pred_region
      _
    $region9: #{mlp_forward.1} parent=1 // pred_fallthru
      _
    // Predicated region
    $region10: #{mlp_forward.1} parent=1 // pred_check
      _
    $region11: #{mlp_forward.1} parent=1 // pred_check_branch
      %20 = sbr.rel (0) target = $region13
    $region12: #{mlp_forward.1} parent=1 // pred_region
      _
    $region13: #{mlp_forward.1} parent=1 // pred_fallthru
      _
    // Predicated region
    $region14: #{mlp_forward.1} parent=1 // pred_check
      _
    $region15: #{mlp_forward.1} parent=1 // pred_check_branch
      %22 = sbr.rel (0) target = $region17
    $region16: #{mlp_forward.1} parent=1 // pred_region
      _
    $region17: #{mlp_forward.1} parent=1 // pred_fallthru
      _
    // Predicated region
    $region18: #{mlp_forward.1} parent=1 // pred_check
      _
    $region19: #{mlp_forward.1} parent=1 // pred_check_branch
      %24 = sbr.rel (0) target = $region21
    $region20: #{mlp_forward.1} parent=1 // pred_region
      _
    $region21: #{mlp_forward.1} parent=1 // pred_fallthru
      _
    // Predicated region
    $region22: #{mlp_forward.1} parent=1 // pred_check
      _
    $region23: #{mlp_forward.1} parent=1 // pred_check_branch
      %26 = sbr.rel (0) target = $region25
    $region24: #{mlp_forward.1} parent=1 // pred_region
      %28 = vsyncadd [#allocation3], 0
      %s29 = sshll.u32 %s5, 4
      %s30 = int_to_ptr.hbm [resolvable:$true] %s29
      %s31 = sshll.u32 [#allocation2], 4
      %s32 = int_to_ptr.vmem [resolvable:$true] %s31
      %37 = dma.hbm_to_vmem [thread:$0]  %s30, 8192, %s32, [#allocation3], 256, 256, 16
    $region25: #{mlp_forward.1} parent=1 // pred_fallthru
      _
    // Predicated region
    $region26: #{mlp_forward.1} parent=1 // pred_check
      _
    $region27: #{mlp_forward.1} parent=1 // pred_check_branch
      %39 = sbr.rel (0) target = $region29
    $region28: #{mlp_forward.1} parent=1 // pred_region
      _
    $region29: #{mlp_forward.1} parent=1 // pred_fallthru
      _
    // Predicated region
    $region30: #{mlp_forward.1} parent=1 // pred_check
      _
    $region31: #{mlp_forward.1} parent=1 // pred_check_branch
      %41 = sbr.rel (0) target = $region33
    $region32: #{mlp_forward.1} parent=1 // pred_region
      _
    $region33: #{mlp_forward.1} parent=1 // pred_fallthru
      _
    // Predicated region
    $region34: #{mlp_forward.1} parent=1 // pred_check
      _
    $region35: #{mlp_forward.1} parent=1 // pred_check_branch
      %43 = sbr.rel (0) target = $region37
    $region36: #{mlp_forward.1} parent=1 // pred_region
      _
    $region37: #{mlp_forward.1} parent=1 // pred_fallthru
      _
    // Predicated region
    $region38: #{mlp_forward.1} parent=1 // pred_check
      _
    $region39: #{mlp_forward.1} parent=1 // pred_check_branch
      %45 = sbr.rel (0) target = $region41
    $region40: #{mlp_forward.1} parent=1 // pred_region
      %47 = dma.done [#allocation3], 8192
    $region41: #{mlp_forward.1} parent=1 // pred_fallthru
      _
    %v48 = vld [vmem:[%s0] sm:$0xff]
    %v49 = vld [vmem:[%s1] sm:$0xff]
    %v50 = vld [vmem:[%s1 + $0x8] sm:$0xff]
    %v51 = vld [vmem:[%s1 + $0x10] sm:$0xff]
    %v52 = vld [vmem:[%s1 + $0x18] sm:$0xff]
    %v53 = vld [vmem:[%s1 + $0x20] sm:$0xff]
    %v54 = vld [vmem:[%s1 + $0x28] sm:$0xff]
    %v55 = vld [vmem:[%s2] sm:$0x1]
    %v57 = vperm.slane %v55, 0
    %vm59 = vcmask 392192
    %v61 = vsel %vm59, %v48, 0
    %63 = vmatpush.msra.mxu0 0.0
    %64 = vmatpush.msra.mxu0 0.0
    %65 = vmatpush.msra.mxu0 0.0
    %66 = vmatpush.msra.mxu0 0.0
    %67 = vmatpush.msra.mxu0 0.0
    %68 = vmatpush.msra.mxu0 0.0
    %69 = vmatpush.msra.mxu0 0.0
    %70 = vmatpush.msra.mxu0 0.0
    %71 = vmatpush.msra.mxu0 0.0
    %72 = vmatpush.msra.mxu0 0.0
    %73 = vmatpush.msra.mxu0 %v54
    %74 = vmatpush.msra.mxu0 %v53
    %75 = vmatpush.msra.mxu0 %v52
    %76 = vmatpush.msra.mxu0 %v51
    %77 = vmatpush.msra.mxu0 %v50
    %78 = vmatpush.msra.mxu0 %v49
    %79 = vmatmul.f32.gmra.mxu0 %v61
    %v80 = vpop.f32.mrf.mxu0
    %v81 = vadd.f32 %v57, %v80
    %82 = vdwg.mxu0
    %v83 = vmax.f32 %v81, 0.0
    %v84 = vld [vmem:[%s3] sm:$0xff]
    %v85 = vld [vmem:[%s3 + $0x8] sm:$0xff]
    %v86 = vld [vmem:[%s3 + $0x10] sm:$0xff]
    %v87 = vld [vmem:[%s3 + $0x18] sm:$0xff]
    %v88 = vld [vmem:[%s3 + $0x20] sm:$0xff]
    %v89 = vld [vmem:[%s3 + $0x28] sm:$0xff]
    %v90 = vld [vmem:[%s3 + $0x30] sm:$0xff]
    %v91 = vld [vmem:[%s3 + $0x38] sm:$0xff]
    %v92 = vld [vmem:[%s3 + $0x40] sm:$0xff]
    %v93 = vld [vmem:[%s3 + $0x48] sm:$0xff]
    %v94 = vld [vmem:[%s3 + $0x50] sm:$0xff]
    %v95 = vld [vmem:[%s3 + $0x58] sm:$0xff]
    %v96 = vld [vmem:[%s3 + $0x60] sm:$0xff]
    %v97 = vld [vmem:[%s3 + $0x68] sm:$0xff]
    %v98 = vld [vmem:[%s3 + $0x70] sm:$0xff]
    %v99 = vld [vmem:[%s3 + $0x78] sm:$0xff]
    %v100 = vld [vmem:[%s3 + $0x80] sm:$0xff]
    %v101 = vld [vmem:[%s3 + $0x88] sm:$0xff]
    %v102 = vld [vmem:[%s3 + $0x90] sm:$0xff]
    %v103 = vld [vmem:[%s3 + $0x98] sm:$0xff]
    %v104 = vld [vmem:[%s3 + $0xa0] sm:$0xff]
    %v105 = vld [vmem:[%s3 + $0xa8] sm:$0xff]
    %v106 = vld [vmem:[%s3 + $0xb0] sm:$0xff]
    %v107 = vld [vmem:[%s3 + $0xb8] sm:$0xff]
    %v108 = vld [vmem:[%s3 + $0xc0] sm:$0xff]
    %v109 = vld [vmem:[%s3 + $0xc8] sm:$0xff]
    %v110 = vld [vmem:[%s3 + $0xd0] sm:$0xff]
    %v111 = vld [vmem:[%s3 + $0xd8] sm:$0xff]
    %v112 = vld [vmem:[%s3 + $0xe0] sm:$0xff]
    %v113 = vld [vmem:[%s3 + $0xe8] sm:$0xff]
    %v114 = vld [vmem:[%s3 + $0xf0] sm:$0xff]
    %v115 = vld [vmem:[%s3 + $0xf8] sm:$0xff]
    %v116 = vld [vmem:[%s4] sm:$0x3]
    %v118 = vperm.slane %v116, 0
    %v119 = vperm.slane %v116, 1
    %122 = vmatpush.msra.mxu0 %v114
    %123 = vmatpush.msra.mxu0 %v112
    %124 = vmatpush.msra.mxu0 %v110
    %125 = vmatpush.msra.mxu0 %v108
    %126 = vmatpush.msra.mxu0 %v106
    %127 = vmatpush.msra.mxu0 %v104
    %128 = vmatpush.msra.mxu0 %v102
    %129 = vmatpush.msra.mxu0 %v100
    %130 = vmatpush.msra.mxu0 %v98
    %131 = vmatpush.msra.mxu0 %v96
    %132 = vmatpush.msra.mxu0 %v94
    %133 = vmatpush.msra.mxu0 %v92
    %134 = vmatpush.msra.mxu0 %v90
    %135 = vmatpush.msra.mxu0 %v88
    %136 = vmatpush.msra.mxu0 %v86
    %137 = vmatpush.msra.mxu0 %v84
    %138 = vmatmul.f32.gmra.mxu0 %v83
    %v139 = vpop.f32.mrf.mxu0
    %v140 = vadd.f32 %v118, %v139
    %141 = vdwg.mxu0
    %142 = vmatpush.msra.mxu0 %v115
    %143 = vmatpush.msra.mxu0 %v113
    %144 = vmatpush.msra.mxu0 %v111
    %145 = vmatpush.msra.mxu0 %v109
    %146 = vmatpush.msra.mxu0 %v107
    %147 = vmatpush.msra.mxu0 %v105
    %148 = vmatpush.msra.mxu0 %v103
    %149 = vmatpush.msra.mxu0 %v101
    %150 = vmatpush.msra.mxu0 %v99
    %151 = vmatpush.msra.mxu0 %v97
    %152 = vmatpush.msra.mxu0 %v95
    %153 = vmatpush.msra.mxu0 %v93
    %154 = vmatpush.msra.mxu0 %v91
    %155 = vmatpush.msra.mxu0 %v89
    %156 = vmatpush.msra.mxu0 %v87
    %157 = vmatpush.msra.mxu0 %v85
    %158 = vmatmul.f32.gmra.mxu0 %v83
    %v159 = vpop.f32.mrf.mxu0
    %v160 = vadd.f32 %v119, %v159
    %161 = vdwg.mxu0
    %v162 = vmax.f32 %v140, 0.0
    %v163 = vmax.f32 %v160, 0.0
    %v164 = vld [vmem:[#allocation2] sm:$0xff]
    %v165 = vld [vmem:[#allocation2 + $0x8] sm:$0xff]
    %v166 = vld [vmem:[#allocation2 + $0x10] sm:$0xff]
    %v167 = vld [vmem:[#allocation2 + $0x18] sm:$0xff]
    %v168 = vld [vmem:[#allocation2 + $0x20] sm:$0xff]
    %v169 = vld [vmem:[#allocation2 + $0x28] sm:$0xff]
    %v170 = vld [vmem:[#allocation2 + $0x30] sm:$0xff]
    %v171 = vld [vmem:[#allocation2 + $0x38] sm:$0xff]
    %v172 = vld [vmem:[#allocation2 + $0x40] sm:$0xff]
    %v173 = vld [vmem:[#allocation2 + $0x48] sm:$0xff]
    %v174 = vld [vmem:[#allocation2 + $0x50] sm:$0xff]
    %v175 = vld [vmem:[#allocation2 + $0x58] sm:$0xff]
    %v176 = vld [vmem:[#allocation2 + $0x60] sm:$0xff]
    %v177 = vld [vmem:[#allocation2 + $0x68] sm:$0xff]
    %v178 = vld [vmem:[#allocation2 + $0x70] sm:$0xff]
    %v179 = vld [vmem:[#allocation2 + $0x78] sm:$0xff]
    %v180 = vld [vmem:[#allocation2 + $0x80] sm:$0xff]
    %v181 = vld [vmem:[#allocation2 + $0x88] sm:$0xff]
    %v182 = vld [vmem:[#allocation2 + $0x90] sm:$0xff]
    %v183 = vld [vmem:[#allocation2 + $0x98] sm:$0xff]
    %v184 = vld [vmem:[#allocation2 + $0xa0] sm:$0xff]
    %v185 = vld [vmem:[#allocation2 + $0xa8] sm:$0xff]
    %v186 = vld [vmem:[#allocation2 + $0xb0] sm:$0xff]
    %v187 = vld [vmem:[#allocation2 + $0xb8] sm:$0xff]
    %v188 = vld [vmem:[#allocation2 + $0xc0] sm:$0xff]
    %v189 = vld [vmem:[#allocation2 + $0xc8] sm:$0xff]
    %v190 = vld [vmem:[#allocation2 + $0xd0] sm:$0xff]
    %v191 = vld [vmem:[#allocation2 + $0xd8] sm:$0xff]
    %v192 = vld [vmem:[#allocation2 + $0xe0] sm:$0xff]
    %v193 = vld [vmem:[#allocation2 + $0xe8] sm:$0xff]
    %v194 = vld [vmem:[#allocation2 + $0xf0] sm:$0xff]
    %v195 = vld [vmem:[#allocation2 + $0xf8] sm:$0xff]
    %v196 = vld [vmem:[#allocation2 + $0x100] sm:$0xff]
    %v197 = vld [vmem:[#allocation2 + $0x108] sm:$0xff]
    %v198 = vld [vmem:[#allocation2 + $0x110] sm:$0xff]
    %v199 = vld [vmem:[#allocation2 + $0x118] sm:$0xff]
    %v200 = vld [vmem:[#allocation2 + $0x120] sm:$0xff]
    %v201 = vld [vmem:[#allocation2 + $0x128] sm:$0xff]
    %v202 = vld [vmem:[#allocation2 + $0x130] sm:$0xff]
    %v203 = vld [vmem:[#allocation2 + $0x138] sm:$0xff]
    %v204 = vld [vmem:[#allocation2 + $0x140] sm:$0xff]
    %v205 = vld [vmem:[#allocation2 + $0x148] sm:$0xff]
    %v206 = vld [vmem:[#allocation2 + $0x150] sm:$0xff]
    %v207 = vld [vmem:[#allocation2 + $0x158] sm:$0xff]
    %v208 = vld [vmem:[#allocation2 + $0x160] sm:$0xff]
    %v209 = vld [vmem:[#allocation2 + $0x168] sm:$0xff]
    %v210 = vld [vmem:[#allocation2 + $0x170] sm:$0xff]
    %v211 = vld [vmem:[#allocation2 + $0x178] sm:$0xff]
    %v212 = vld [vmem:[#allocation2 + $0x180] sm:$0xff]
    %v213 = vld [vmem:[#allocation2 + $0x188] sm:$0xff]
    %v214 = vld [vmem:[#allocation2 + $0x190] sm:$0xff]
    %v215 = vld [vmem:[#allocation2 + $0x198] sm:$0xff]
    %v216 = vld [vmem:[#allocation2 + $0x1a0] sm:$0xff]
    %v217 = vld [vmem:[#allocation2 + $0x1a8] sm:$0xff]
    %v218 = vld [vmem:[#allocation2 + $0x1b0] sm:$0xff]
    %v219 = vld [vmem:[#allocation2 + $0x1b8] sm:$0xff]
    %v220 = vld [vmem:[#allocation2 + $0x1c0] sm:$0xff]
    %v221 = vld [vmem:[#allocation2 + $0x1c8] sm:$0xff]
    %v222 = vld [vmem:[#allocation2 + $0x1d0] sm:$0xff]
    %v223 = vld [vmem:[#allocation2 + $0x1d8] sm:$0xff]
    %v224 = vld [vmem:[#allocation2 + $0x1e0] sm:$0xff]
    %v225 = vld [vmem:[#allocation2 + $0x1e8] sm:$0xff]
    %v226 = vld [vmem:[#allocation2 + $0x1f0] sm:$0xff]
    %v227 = vld [vmem:[#allocation2 + $0x1f8] sm:$0xff]
    %v228 = vld [vmem:[%s6] sm:$0x3]
    %v230 = vperm.slane %v228, 0
    %v231 = vperm.slane %v228, 1
    %234 = vmatpush.msra.mxu0 %v194
    %235 = vmatpush.msra.mxu0 %v192
    %236 = vmatpush.msra.mxu0 %v190
    %237 = vmatpush.msra.mxu0 %v188
    %238 = vmatpush.msra.mxu0 %v186
    %239 = vmatpush.msra.mxu0 %v184
    %240 = vmatpush.msra.mxu0 %v182
    %241 = vmatpush.msra.mxu0 %v180
    %242 = vmatpush.msra.mxu0 %v178
    %243 = vmatpush.msra.mxu0 %v176
    %244 = vmatpush.msra.mxu0 %v174
    %245 = vmatpush.msra.mxu0 %v172
    %246 = vmatpush.msra.mxu0 %v170
    %247 = vmatpush.msra.mxu0 %v168
    %248 = vmatpush.msra.mxu0 %v166
    %249 = vmatpush.msra.mxu0 %v164
    %250 = vmatmul.f32.gmra.mxu0 %v162
    %v251 = vpop.f32.mrf.mxu0
    %v252 = vadd.f32 %v230, %v251
    %253 = vdwg.mxu0
    %254 = vmatpush.msra.mxu0 %v226
    %255 = vmatpush.msra.mxu0 %v224
    %256 = vmatpush.msra.mxu0 %v222
    %257 = vmatpush.msra.mxu0 %v220
    %258 = vmatpush.msra.mxu0 %v218
    %259 = vmatpush.msra.mxu0 %v216
    %260 = vmatpush.msra.mxu0 %v214
    %261 = vmatpush.msra.mxu0 %v212
    %262 = vmatpush.msra.mxu0 %v210
    %263 = vmatpush.msra.mxu0 %v208
    %264 = vmatpush.msra.mxu0 %v206
    %265 = vmatpush.msra.mxu0 %v204
    %266 = vmatpush.msra.mxu0 %v202
    %267 = vmatpush.msra.mxu0 %v200
    %268 = vmatpush.msra.mxu0 %v198
    %269 = vmatpush.msra.mxu0 %v196
    %270 = vmatmul.f32.gmra.mxu0 %v163
    %v271 = vpop.f32.mrf.mxu0
    %v272 = vadd.f32 %v252, %v271
    %273 = vdwg.mxu0
    %274 = vmatpush.msra.mxu0 %v195
    %275 = vmatpush.msra.mxu0 %v193
    %276 = vmatpush.msra.mxu0 %v191
    %277 = vmatpush.msra.mxu0 %v189
    %278 = vmatpush.msra.mxu0 %v187
    %279 = vmatpush.msra.mxu0 %v185
    %280 = vmatpush.msra.mxu0 %v183
    %281 = vmatpush.msra.mxu0 %v181
    %282 = vmatpush.msra.mxu0 %v179
    %283 = vmatpush.msra.mxu0 %v177
    %284 = vmatpush.msra.mxu0 %v175
    %285 = vmatpush.msra.mxu0 %v173
    %286 = vmatpush.msra.mxu0 %v171
    %287 = vmatpush.msra.mxu0 %v169
    %288 = vmatpush.msra.mxu0 %v167
    %289 = vmatpush.msra.mxu0 %v165
    %290 = vmatmul.f32.gmra.mxu0 %v162
    %v291 = vpop.f32.mrf.mxu0
    %v292 = vadd.f32 %v231, %v291
    %293 = vdwg.mxu0
    %294 = vmatpush.msra.mxu0 %v227
    %295 = vmatpush.msra.mxu0 %v225
    %296 = vmatpush.msra.mxu0 %v223
    %297 = vmatpush.msra.mxu0 %v221
    %298 = vmatpush.msra.mxu0 %v219
    %299 = vmatpush.msra.mxu0 %v217
    %300 = vmatpush.msra.mxu0 %v215
    %301 = vmatpush.msra.mxu0 %v213
    %302 = vmatpush.msra.mxu0 %v211
    %303 = vmatpush.msra.mxu0 %v209
    %304 = vmatpush.msra.mxu0 %v207
    %305 = vmatpush.msra.mxu0 %v205
    %306 = vmatpush.msra.mxu0 %v203
    %307 = vmatpush.msra.mxu0 %v201
    %308 = vmatpush.msra.mxu0 %v199
    %309 = vmatpush.msra.mxu0 %v197
    %310 = vmatmul.f32.gmra.mxu0 %v163
    %v311 = vpop.f32.mrf.mxu0
    %v312 = vadd.f32 %v292, %v311
    %313 = vdwg.mxu0
    %v314 = vmax.f32 %v272, 0.0
    %v315 = vmax.f32 %v312, 0.0
    %v316 = vld [vmem:[%s7] sm:$0xff]
    %v317 = vld [vmem:[%s7 + $0x8] sm:$0xff]
    %v318 = vld [vmem:[%s7 + $0x10] sm:$0xff]
    %v319 = vld [vmem:[%s7 + $0x18] sm:$0xff]
    %v320 = vld [vmem:[%s7 + $0x20] sm:$0xff]
    %v321 = vld [vmem:[%s7 + $0x28] sm:$0xff]
    %v322 = vld [vmem:[%s7 + $0x30] sm:$0xff]
    %v323 = vld [vmem:[%s7 + $0x38] sm:$0xff]
    %v324 = vld [vmem:[%s7 + $0x40] sm:$0xff]
    %v325 = vld [vmem:[%s7 + $0x48] sm:$0xff]
    %v326 = vld [vmem:[%s7 + $0x50] sm:$0xff]
    %v327 = vld [vmem:[%s7 + $0x58] sm:$0xff]
    %v328 = vld [vmem:[%s7 + $0x60] sm:$0xff]
    %v329 = vld [vmem:[%s7 + $0x68] sm:$0xff]
    %v330 = vld [vmem:[%s7 + $0x70] sm:$0xff]
    %v331 = vld [vmem:[%s7 + $0x78] sm:$0xff]
    %v332 = vld [vmem:[%s7 + $0x80] sm:$0xff]
    %v333 = vld [vmem:[%s7 + $0x88] sm:$0xff]
    %v334 = vld [vmem:[%s7 + $0x90] sm:$0xff]
    %v335 = vld [vmem:[%s7 + $0x98] sm:$0xff]
    %v336 = vld [vmem:[%s7 + $0xa0] sm:$0xff]
    %v337 = vld [vmem:[%s7 + $0xa8] sm:$0xff]
    %v338 = vld [vmem:[%s7 + $0xb0] sm:$0xff]
    %v339 = vld [vmem:[%s7 + $0xb8] sm:$0xff]
    %v340 = vld [vmem:[%s7 + $0xc0] sm:$0xff]
    %v341 = vld [vmem:[%s7 + $0xc8] sm:$0xff]
    %v342 = vld [vmem:[%s7 + $0xd0] sm:$0xff]
    %v343 = vld [vmem:[%s7 + $0xd8] sm:$0xff]
    %v344 = vld [vmem:[%s7 + $0xe0] sm:$0xff]
    %v345 = vld [vmem:[%s7 + $0xe8] sm:$0xff]
    %v346 = vld [vmem:[%s7 + $0xf0] sm:$0xff]
    %v347 = vld [vmem:[%s7 + $0xf8] sm:$0xff]
    %v348 = vld [vmem:[%s8] sm:$0x1]
    %v350 = vperm.slane %v348, 0
    %352 = vmatpush.msra.mxu0 %v331
    %353 = vmatpush.msra.mxu0 %v330
    %354 = vmatpush.msra.mxu0 %v329
    %355 = vmatpush.msra.mxu0 %v328
    %356 = vmatpush.msra.mxu0 %v327
    %357 = vmatpush.msra.mxu0 %v326
    %358 = vmatpush.msra.mxu0 %v325
    %359 = vmatpush.msra.mxu0 %v324
    %360 = vmatpush.msra.mxu0 %v323
    %361 = vmatpush.msra.mxu0 %v322
    %362 = vmatpush.msra.mxu0 %v321
    %363 = vmatpush.msra.mxu0 %v320
    %364 = vmatpush.msra.mxu0 %v319
    %365 = vmatpush.msra.mxu0 %v318
    %366 = vmatpush.msra.mxu0 %v317
    %367 = vmatpush.msra.mxu0 %v316
    %368 = vmatmul.f32.gmra.mxu0 %v314
    %v369 = vpop.f32.mrf.mxu0
    %v370 = vadd.f32 %v350, %v369
    %371 = vdwg.mxu0
    %372 = vmatpush.msra.mxu0 %v347
    %373 = vmatpush.msra.mxu0 %v346
    %374 = vmatpush.msra.mxu0 %v345
    %375 = vmatpush.msra.mxu0 %v344
    %376 = vmatpush.msra.mxu0 %v343
    %377 = vmatpush.msra.mxu0 %v342
    %378 = vmatpush.msra.mxu0 %v341
    %379 = vmatpush.msra.mxu0 %v340
    %380 = vmatpush.msra.mxu0 %v339
    %381 = vmatpush.msra.mxu0 %v338
    %382 = vmatpush.msra.mxu0 %v337
    %383 = vmatpush.msra.mxu0 %v336
    %384 = vmatpush.msra.mxu0 %v335
    %385 = vmatpush.msra.mxu0 %v334
    %386 = vmatpush.msra.mxu0 %v333
    %387 = vmatpush.msra.mxu0 %v332
    %388 = vmatmul.f32.gmra.mxu0 %v315
    %v389 = vpop.f32.mrf.mxu0
    %v390 = vadd.f32 %v370, %v389
    %391 = vdwg.mxu0
    %vm392 = vcmask 261120
    %393 = vst.msk [vmem:[%s9] sm:$0xff] %vm392, %v390
    // Predicated region
    $region42: #{mlp_forward.1} parent=1 // pred_check
      _
    $region43: #{mlp_forward.1} parent=1 // pred_check_branch
      %395 = sbr.rel (0) target = $region45
    $region44: #{mlp_forward.1} parent=1 // pred_region
      _
    $region45: #{mlp_forward.1} parent=1 // pred_fallthru
      _
    // Predicated region
    $region46: #{mlp_forward.1} parent=1 // pred_check
      _
    $region47: #{mlp_forward.1} parent=1 // pred_check_branch
      %397 = sbr.rel (0) target = $region49
    $region48: #{mlp_forward.1} parent=1 // pred_region
      _
    $region49: #{mlp_forward.1} parent=1 // pred_fallthru
      _
    %398 = vsyncpa [#allocation3], 1

</llo_original>
